<compile_context>
chip_gen: v5e
topology: v5e:2x2
jax: 0.10.0
libtpu: 0.0.40
codegen_flags: <defaults>
</compile_context>

<pallas_src>
import functools

import jax
import jax.numpy as jnp
from jax import lax
from jax.experimental import pallas as pl
from jax.experimental.pallas import tpu as pltpu

LANE = 128  # TPU lane width: pad feature dims to multiples of this.


def _pad_axis(arr, axis, multiple=LANE):
    pad = (-arr.shape[axis]) % multiple
    if pad == 0:
        return arr
    widths = [(0, 0)] * arr.ndim
    widths[axis] = (0, pad)
    return jnp.pad(arr, widths)


def _degree_norms(a):
    """rsqrt of clamped in/out degrees of a dense (N_dst, N_src) block, as columns."""
    a32 = a.astype(jnp.float32)
    in_deg = jnp.sum(a32, axis=1, keepdims=True)                  # (N_dst, 1) dst in-degree
    out_deg = jnp.sum(a32, axis=0)                                # (N_src,)  src out-degree
    norm_dst = lax.rsqrt(jnp.maximum(in_deg, 1.0))                # (N_dst, 1)
    norm_src = lax.rsqrt(jnp.maximum(out_deg, 1.0))[:, None]      # (N_src, 1)
    return norm_src, norm_dst


def _gcn_fused_kernel(*refs, layer_feats, n_blocks):
    """Fused multi-layer GraphConv forward.

    refs = [A_0..A_{nb-1}, ns_0..ns_{nb-1}, nd_0..nd_{nb-1}, x,
            w_0, b_0, ..., w_{L-1}, b_{L-1}, out]
    """
    n_layers = len(layer_feats)
    i = 0
    a_refs = refs[i:i + n_blocks]; i += n_blocks
    ns_refs = refs[i:i + n_blocks]; i += n_blocks
    nd_refs = refs[i:i + n_blocks]; i += n_blocks
    x_ref = refs[i]; i += 1
    wb_refs = refs[i:i + 2 * n_layers]; i += 2 * n_layers
    o_ref = refs[i]

    # Cache block loads: a shared adjacency (and its norms) is read from VMEM once.
    a_val = [None] * n_blocks
    ns_val = [None] * n_blocks
    nd_val = [None] * n_blocks

    h = x_ref[...].astype(jnp.float32)            # intermediate h lives on-chip only
    for l in range(n_layers):
        bi = l if n_blocks > 1 else 0
        if a_val[bi] is None:
            a_val[bi] = a_refs[bi][...]           # bf16 0/1 adjacency (exact cast)
            ns_val[bi] = ns_refs[bi][...]         # (N_src, 1) f32 src norm
            nd_val[bi] = nd_refs[bi][...]         # (N_dst, 1) f32 dst norm
        a, ns, nd = a_val[bi], ns_val[bi], nd_val[bi]
        w = wb_refs[2 * l][...]
        b = wb_refs[2 * l + 1][...]

        f_in, f_out = layer_feats[l]
        project_first = f_in > f_out              # DGL GraphConv order heuristic
        if project_first:
            h = jnp.dot(h, w, preferred_element_type=jnp.float32)
        # Feature-side symmetric normalization (no O(N^2) scaling of A).
        z = (h * ns).astype(jnp.bfloat16)
        h = jnp.dot(a, z, preferred_element_type=jnp.float32)    # MXU bf16 x bf16 -> f32
        h = h * nd
        if not project_first:
            h = jnp.dot(h, w, preferred_element_type=jnp.float32)
        h = h + b
        if l != n_layers - 1:
            h = jnp.maximum(h, 0.0)               # ReLU on layers 1,2; dropout(p=0) == id

    o_ref[...] = h.astype(o_ref.dtype)


def gcn_forward(adjs, x, params):
    """Equivalent of GCN.forward(blocks, x), all three layers in one pallas_call."""
    n_layers = len(params)
    assert len(adjs) == n_layers
    # Full-neighbor blocks over one graph pass the same adjacency to every layer:
    # detect that and feed A (and its degree norms) to the kernel only once.
    shared = all(adj is adjs[0] for adj in adjs)
    blocks = [adjs[0]] if shared else list(adjs)

    a_in = [blk.astype(jnp.bfloat16) for blk in blocks]           # exact for 0/1 adjacency
    norms = [_degree_norms(blk) for blk in blocks]                # computed once per block
    ns_in = [n[0] for n in norms]
    nd_in = [n[1] for n in norms]

    x_p = _pad_axis(x, axis=1)                                    # lane-dense features
    wb_in = []
    layer_feats = []
    for w, b in params:
        layer_feats.append((w.shape[0], w.shape[1]))
        wb_in.append(_pad_axis(_pad_axis(w, 0), 1))
        wb_in.append(_pad_axis(b.reshape(1, -1), 1))

    out_size = params[-1][0].shape[1]
    f_out_p = wb_in[-1].shape[1]
    n_dst_last = adjs[-1].shape[0]

    inputs = a_in + ns_in + nd_in + [x_p] + wb_in
    in_specs = [pl.BlockSpec(arr.shape, lambda i: (0, 0)) for arr in inputs]

    kernel = functools.partial(
        _gcn_fused_kernel,
        layer_feats=tuple(layer_feats),
        n_blocks=len(blocks),
    )

    out_p = pl.pallas_call(
        kernel,
        out_shape=jax.ShapeDtypeStruct((n_dst_last, f_out_p), x.dtype),
        grid=(1,),
        in_specs=in_specs,
        out_specs=pl.BlockSpec((n_dst_last, f_out_p), lambda i: (0, 0)),
        compiler_params=pltpu.CompilerParams(dimension_semantics=("arbitrary",)),
    )(*inputs)
    return out_p[:, :out_size]


def init_params(key, in_size, hid_size, out_size):
    """Deterministic init matching DGL GraphConv: xavier-uniform W, zero bias."""
    sizes = [(in_size, hid_size), (hid_size, hid_size), (hid_size, out_size)]
    params = []
    for fi, fo in sizes:
        key, sub = jax.random.split(key)
        limit = (6.0 / (fi + fo)) ** 0.5
        w = jax.random.uniform(sub, (fi, fo), jnp.float32, -limit, limit)
        b = jnp.zeros((fo,), jnp.float32)
        params.append((w, b))
    return params


def _gcn_reference(adjs, x, params):
    """Pure-JAX f32 reference of DGL GraphConv(norm='both') x3 with ReLU on first two."""
    h = x
    n_layers = len(params)
    for l, ((w, b), a) in enumerate(zip(params, adjs)):
        a32 = a.astype(jnp.float32)
        ns = lax.rsqrt(jnp.maximum(jnp.sum(a32, axis=0), 1.0))[:, None]
        nd = lax.rsqrt(jnp.maximum(jnp.sum(a32, axis=1, keepdims=True), 1.0))
        h = (nd * (a32 @ (ns * h))) @ w + b
        if l != n_layers - 1:
            h = jnp.maximum(h, 0.0)
    return h


if __name__ == "__main__":
    key = jax.random.PRNGKey(0)
    N = 16                      # graph nodes (src == dst for full-neighbor blocks)
    in_size, hid_size, out_size = 16, 32, 8

    k_x, k_a, k_p = jax.random.split(key, 3)
    x = jax.random.normal(k_x, (N, in_size), jnp.float32)
    # Dense adjacency for each "block" (full-neighbor blocks over the same graph).
    a = (jax.random.uniform(k_a, (N, N)) < 0.3).astype(jnp.float32)
    adjs = [a, a, a]            # same object -> shared-adjacency fast path
    params = init_params(k_p, in_size, hid_size, out_size)

    out = gcn_forward(adjs, x, params)
    out = jax.block_until_ready(out)
    assert out.shape == (N, out_size) and out.dtype == jnp.float32
    assert bool(jnp.all(jnp.isfinite(out)))

    ref = _gcn_reference(adjs, x, params)
    err = float(jnp.max(jnp.abs(out - ref)))
    assert err < 5e-2, f"mismatch vs reference: {err}"
    print("KERNEL_OK")
</pallas_src>

<mosaic_0001>
module attributes {stable_mosaic.version = 11 : i64} {
  func.func @_gcn_fused_kernel(%arg0: i32, %arg1: memref<16x16xbf16, #tpu.memory_space<vmem>>, %arg2: memref<16x1xf32, #tpu.memory_space<vmem>>, %arg3: memref<16x1xf32, #tpu.memory_space<vmem>>, %arg4: memref<16x128xf32, #tpu.memory_space<vmem>>, %arg5: memref<128x128xf32, #tpu.memory_space<vmem>>, %arg6: memref<1x128xf32, #tpu.memory_space<vmem>>, %arg7: memref<128x128xf32, #tpu.memory_space<vmem>>, %arg8: memref<1x128xf32, #tpu.memory_space<vmem>>, %arg9: memref<128x128xf32, #tpu.memory_space<vmem>>, %arg10: memref<1x128xf32, #tpu.memory_space<vmem>>, %arg11: memref<16x128xf32, #tpu.memory_space<vmem>>) attributes {dimension_semantics = [#tpu.dimension_semantics<arbitrary>], iteration_bounds = array<i64: 1>, scalar_prefetch = 0 : i64, scratch_operands = 0 : i64, tpu.core_type = #tpu.core_type<tc>, window_params = [{pipeline_mode = #tpu.pipeline_mode<synchronous>, transform_indices = @transform_0, window_bounds = array<i64: 16, 16>}, {pipeline_mode = #tpu.pipeline_mode<synchronous>, transform_indices = @transform_1, window_bounds = array<i64: 16, 1>}, {pipeline_mode = #tpu.pipeline_mode<synchronous>, transform_indices = @transform_2, window_bounds = array<i64: 16, 1>}, {pipeline_mode = #tpu.pipeline_mode<synchronous>, transform_indices = @transform_3, window_bounds = array<i64: 16, 128>}, {pipeline_mode = #tpu.pipeline_mode<synchronous>, transform_indices = @transform_4, window_bounds = array<i64: 128, 128>}, {pipeline_mode = #tpu.pipeline_mode<synchronous>, transform_indices = @transform_5, window_bounds = array<i64: 1, 128>}, {pipeline_mode = #tpu.pipeline_mode<synchronous>, transform_indices = @transform_6, window_bounds = array<i64: 128, 128>}, {pipeline_mode = #tpu.pipeline_mode<synchronous>, transform_indices = @transform_7, window_bounds = array<i64: 1, 128>}, {pipeline_mode = #tpu.pipeline_mode<synchronous>, transform_indices = @transform_8, window_bounds = array<i64: 128, 128>}, {pipeline_mode = #tpu.pipeline_mode<synchronous>, transform_indices = @transform_9, window_bounds = array<i64: 1, 128>}, {pipeline_mode = #tpu.pipeline_mode<synchronous>, transform_indices = @transform_10, window_bounds = array<i64: 16, 128>}]} {
    %c0 = arith.constant 0 : index
    %c0_0 = arith.constant 0 : index
    %0 = vector.load %arg4[%c0, %c0_0] : memref<16x128xf32, #tpu.memory_space<vmem>>, vector<16x128xf32>
    %c0_1 = arith.constant 0 : index
    %c0_2 = arith.constant 0 : index
    %1 = vector.load %arg1[%c0_1, %c0_2] : memref<16x16xbf16, #tpu.memory_space<vmem>>, vector<16x16xbf16>
    %c0_3 = arith.constant 0 : index
    %c0_4 = arith.constant 0 : index
    %2 = vector.load %arg2[%c0_3, %c0_4] : memref<16x1xf32, #tpu.memory_space<vmem>>, vector<16x1xf32>
    %c0_5 = arith.constant 0 : index
    %c0_6 = arith.constant 0 : index
    %3 = vector.load %arg3[%c0_5, %c0_6] : memref<16x1xf32, #tpu.memory_space<vmem>>, vector<16x1xf32>
    %c0_7 = arith.constant 0 : index
    %c0_8 = arith.constant 0 : index
    %4 = vector.load %arg5[%c0_7, %c0_8] : memref<128x128xf32, #tpu.memory_space<vmem>>, vector<128x128xf32>
    %c0_9 = arith.constant 0 : index
    %c0_10 = arith.constant 0 : index
    %5 = vector.load %arg6[%c0_9, %c0_10] : memref<1x128xf32, #tpu.memory_space<vmem>>, vector<1x128xf32>
    %6 = vector.broadcast %2 : vector<16x1xf32> to vector<16x128xf32>
    %7 = arith.mulf %0, %6 : vector<16x128xf32>
    %8 = arith.truncf %7 : vector<16x128xf32> to vector<16x128xbf16>
    %cst = arith.constant dense<0.000000e+00> : vector<16x128xf32>
    %9 = tpu.matmul %1, %8, %cst {dimension_numbers = #tpu.dot_dimension_numbers<[1], [0], [0], [1], [0, 0, 1, 1], [], []>} : vector<16x16xbf16>, vector<16x128xbf16>, vector<16x128xf32> -> vector<16x128xf32>
    %10 = vector.broadcast %3 : vector<16x1xf32> to vector<16x128xf32>
    %11 = arith.mulf %9, %10 : vector<16x128xf32>
    %cst_11 = arith.constant dense<0.000000e+00> : vector<16x128xf32>
    %12 = tpu.matmul %11, %4, %cst_11 {dimension_numbers = #tpu.dot_dimension_numbers<[1], [0], [0], [1], [0, 0, 1, 1], [], []>} : vector<16x128xf32>, vector<128x128xf32>, vector<16x128xf32> -> vector<16x128xf32>
    %13 = vector.broadcast %5 : vector<1x128xf32> to vector<16x128xf32>
    %14 = arith.addf %12, %13 : vector<16x128xf32>
    %cst_12 = arith.constant 0.000000e+00 : f32
    %15 = vector.broadcast %cst_12 : f32 to vector<16x128xf32>
    %16 = arith.maximumf %14, %15 : vector<16x128xf32>
    %c0_13 = arith.constant 0 : index
    %c0_14 = arith.constant 0 : index
    %17 = vector.load %arg7[%c0_13, %c0_14] : memref<128x128xf32, #tpu.memory_space<vmem>>, vector<128x128xf32>
    %c0_15 = arith.constant 0 : index
    %c0_16 = arith.constant 0 : index
    %18 = vector.load %arg8[%c0_15, %c0_16] : memref<1x128xf32, #tpu.memory_space<vmem>>, vector<1x128xf32>
    %19 = vector.broadcast %2 : vector<16x1xf32> to vector<16x128xf32>
    %20 = arith.mulf %16, %19 : vector<16x128xf32>
    %21 = arith.truncf %20 : vector<16x128xf32> to vector<16x128xbf16>
    %cst_17 = arith.constant dense<0.000000e+00> : vector<16x128xf32>
    %22 = tpu.matmul %1, %21, %cst_17 {dimension_numbers = #tpu.dot_dimension_numbers<[1], [0], [0], [1], [0, 0, 1, 1], [], []>} : vector<16x16xbf16>, vector<16x128xbf16>, vector<16x128xf32> -> vector<16x128xf32>
    %23 = vector.broadcast %3 : vector<16x1xf32> to vector<16x128xf32>
    %24 = arith.mulf %22, %23 : vector<16x128xf32>
    %cst_18 = arith.constant dense<0.000000e+00> : vector<16x128xf32>
    %25 = tpu.matmul %24, %17, %cst_18 {dimension_numbers = #tpu.dot_dimension_numbers<[1], [0], [0], [1], [0, 0, 1, 1], [], []>} : vector<16x128xf32>, vector<128x128xf32>, vector<16x128xf32> -> vector<16x128xf32>
    %26 = vector.broadcast %18 : vector<1x128xf32> to vector<16x128xf32>
    %27 = arith.addf %25, %26 : vector<16x128xf32>
    %cst_19 = arith.constant 0.000000e+00 : f32
    %28 = vector.broadcast %cst_19 : f32 to vector<16x128xf32>
    %29 = arith.maximumf %27, %28 : vector<16x128xf32>
    %c0_20 = arith.constant 0 : index
    %c0_21 = arith.constant 0 : index
    %30 = vector.load %arg9[%c0_20, %c0_21] : memref<128x128xf32, #tpu.memory_space<vmem>>, vector<128x128xf32>
    %c0_22 = arith.constant 0 : index
    %c0_23 = arith.constant 0 : index
    %31 = vector.load %arg10[%c0_22, %c0_23] : memref<1x128xf32, #tpu.memory_space<vmem>>, vector<1x128xf32>
    %cst_24 = arith.constant dense<0.000000e+00> : vector<16x128xf32>
    %32 = tpu.matmul %29, %30, %cst_24 {dimension_numbers = #tpu.dot_dimension_numbers<[1], [0], [0], [1], [0, 0, 1, 1], [], []>} : vector<16x128xf32>, vector<128x128xf32>, vector<16x128xf32> -> vector<16x128xf32>
    %33 = vector.broadcast %2 : vector<16x1xf32> to vector<16x128xf32>
    %34 = arith.mulf %32, %33 : vector<16x128xf32>
    %35 = arith.truncf %34 : vector<16x128xf32> to vector<16x128xbf16>
    %cst_25 = arith.constant dense<0.000000e+00> : vector<16x128xf32>
    %36 = tpu.matmul %1, %35, %cst_25 {dimension_numbers = #tpu.dot_dimension_numbers<[1], [0], [0], [1], [0, 0, 1, 1], [], []>} : vector<16x16xbf16>, vector<16x128xbf16>, vector<16x128xf32> -> vector<16x128xf32>
    %37 = vector.broadcast %3 : vector<16x1xf32> to vector<16x128xf32>
    %38 = arith.mulf %36, %37 : vector<16x128xf32>
    %39 = vector.broadcast %31 : vector<1x128xf32> to vector<16x128xf32>
    %40 = arith.addf %38, %39 : vector<16x128xf32>
    %c0_26 = arith.constant 0 : index
    %c0_27 = arith.constant 0 : index
    %41 = vector.load %arg11[%c0_26, %c0_27] : memref<16x128xf32, #tpu.memory_space<vmem>>, vector<16x128xf32>
    tpu.vector_store %arg11[%c0_26, %c0_27], %40 {strides = array<i32>} : memref<16x128xf32, #tpu.memory_space<vmem>>, vector<16x128xf32>,
    return
  }
  func.func @transform_0(%arg0: i32) -> (i32, i32) {
    %c0_i32 = arith.constant 0 : i32
    %c0_i32_0 = arith.constant 0 : i32
    %c0_i32_1 = arith.constant 0 : i32
    return %c0_i32, %c0_i32_0 : i32, i32
  }
  func.func @transform_1(%arg0: i32) -> (i32, i32) {
    %c0_i32 = arith.constant 0 : i32
    %c0_i32_0 = arith.constant 0 : i32
    %c0_i32_1 = arith.constant 0 : i32
    return %c0_i32, %c0_i32_0 : i32, i32
  }
  func.func @transform_2(%arg0: i32) -> (i32, i32) {
    %c0_i32 = arith.constant 0 : i32
    %c0_i32_0 = arith.constant 0 : i32
    %c0_i32_1 = arith.constant 0 : i32
    return %c0_i32, %c0_i32_0 : i32, i32
  }
  func.func @transform_3(%arg0: i32) -> (i32, i32) {
    %c0_i32 = arith.constant 0 : i32
    %c0_i32_0 = arith.constant 0 : i32
    %c0_i32_1 = arith.constant 0 : i32
    return %c0_i32, %c0_i32_0 : i32, i32
  }
  func.func @transform_4(%arg0: i32) -> (i32, i32) {
    %c0_i32 = arith.constant 0 : i32
    %c0_i32_0 = arith.constant 0 : i32
    %c0_i32_1 = arith.constant 0 : i32
    return %c0_i32, %c0_i32_0 : i32, i32
  }
  func.func @transform_5(%arg0: i32) -> (i32, i32) {
    %c0_i32 = arith.constant 0 : i32
    %c0_i32_0 = arith.constant 0 : i32
    %c0_i32_1 = arith.constant 0 : i32
    return %c0_i32, %c0_i32_0 : i32, i32
  }
  func.func @transform_6(%arg0: i32) -> (i32, i32) {
    %c0_i32 = arith.constant 0 : i32
    %c0_i32_0 = arith.constant 0 : i32
    %c0_i32_1 = arith.constant 0 : i32
    return %c0_i32, %c0_i32_0 : i32, i32
  }
  func.func @transform_7(%arg0: i32) -> (i32, i32) {
    %c0_i32 = arith.constant 0 : i32
    %c0_i32_0 = arith.constant 0 : i32
    %c0_i32_1 = arith.constant 0 : i32
    return %c0_i32, %c0_i32_0 : i32, i32
  }
  func.func @transform_8(%arg0: i32) -> (i32, i32) {
    %c0_i32 = arith.constant 0 : i32
    %c0_i32_0 = arith.constant 0 : i32
    %c0_i32_1 = arith.constant 0 : i32
    return %c0_i32, %c0_i32_0 : i32, i32
  }
  func.func @transform_9(%arg0: i32) -> (i32, i32) {
    %c0_i32 = arith.constant 0 : i32
    %c0_i32_0 = arith.constant 0 : i32
    %c0_i32_1 = arith.constant 0 : i32
    return %c0_i32, %c0_i32_0 : i32, i32
  }
  func.func @transform_10(%arg0: i32) -> (i32, i32) {
    %c0_i32 = arith.constant 0 : i32
    %c0_i32_0 = arith.constant 0 : i32
    %c0_i32_1 = arith.constant 0 : i32
    return %c0_i32, %c0_i32_0 : i32, i32
  }
}

</mosaic_0001>

<llo_original>
// kernel: tpu_custom_call.1
$region0: #{tpu_custom_call.1}
  #allocation0 [shape = 'u32[]', space=smem, size = 0x4, offset = 0x4, fixed_abs, tag = 'smem constant byte address 0x4 - core index']
  #allocation1 [shape = 'u32[72,128]{1,0:T(1,128)}', space=vmem, size = 0x9000, scoped, tag = 'internal scratch']
  %s0 = inlined_call_operand.vmem [shape: bf16[16,16], index: 0, kind: input, shape index: {}]
  %s1 = inlined_call_operand.vmem [shape: f32[16,1], index: 1, kind: input, shape index: {}]
  %s2 = inlined_call_operand.vmem [shape: f32[16,1], index: 2, kind: input, shape index: {}]
  %s3 = inlined_call_operand.vmem [shape: f32[16,128], index: 3, kind: input, shape index: {}]
  %s4 = inlined_call_operand.hbm [shape: f32[128,128], index: 4, kind: input, shape index: {}]
  %s5 = inlined_call_operand.vmem [shape: f32[1,128], index: 5, kind: input, shape index: {}]
  %s6 = inlined_call_operand.hbm [shape: f32[128,128], index: 6, kind: input, shape index: {}]
  %s7 = inlined_call_operand.vmem [shape: f32[1,128], index: 7, kind: input, shape index: {}]
  %s8 = inlined_call_operand.hbm [shape: f32[128,128], index: 8, kind: input, shape index: {}]
  %s9 = inlined_call_operand.vmem [shape: f32[1,128], index: 9, kind: input, shape index: {}]
  %s10 = inlined_call_operand.hbm [shape: f32[16,128], index: 10, kind: output, shape index: {}]
  %s11 = sld [smem:[#allocation0]]
  $region62: #{tpu_custom_call.1} parent=0
    _
  %s13 = ssub.s32 1, %s11
  %s14 = scalar_select 0, %s13, %s11
  $region1: #{tpu_custom_call.1} parent=0
    #allocation2 [shape = 'u8[65536]{0}', space=vmem, size = 0x10000, scoped, tag = 'input window, operand 4, single buffered']
    #allocation3 [shape = 's32[1]{0}', space=sflag, size = 0x4, scoped, tag = 'scoped memory for tpu_custom_call.1']
    #allocation4 [shape = 's32[1]{0}', space=sflag, size = 0x4, scoped, tag = 'scoped memory for tpu_custom_call.1']
    #allocation5 [shape = 'u8[65536]{0}', space=vmem, size = 0x10000, scoped, tag = 'input window, operand 6, single buffered']
    #allocation6 [shape = 's32[1]{0}', space=sflag, size = 0x4, scoped, tag = 'scoped memory for tpu_custom_call.1']
    #allocation7 [shape = 'u8[65536]{0}', space=vmem, size = 0x10000, scoped, tag = 'input window, operand 8, single buffered']
    #allocation8 [shape = 'u8[8192]{0}', space=vmem, size = 0x2000, scoped, tag = 'output window, operand 0, single buffered']
    %15 = vsyncpa [#allocation3], 0
    %16 = vsyncpa [#allocation6], 0
    %17 = vsyncpa [#allocation4], 0
    // Predicated region
    $region2: #{tpu_custom_call.1} parent=1 // pred_check
      _
    $region3: #{tpu_custom_call.1} parent=1 // pred_check_branch
      %19 = sbr.rel (0) target = $region5
    $region4: #{tpu_custom_call.1} parent=1 // pred_region
      _
    $region5: #{tpu_custom_call.1} parent=1 // pred_fallthru
      _
    // Predicated region
    $region6: #{tpu_custom_call.1} parent=1 // pred_check
      _
    $region7: #{tpu_custom_call.1} parent=1 // pred_check_branch
      %21 = sbr.rel (0) target = $region9
    $region8: #{tpu_custom_call.1} parent=1 // pred_region
      _
    $region9: #{tpu_custom_call.1} parent=1 // pred_fallthru
      _
    // Predicated region
    $region10: #{tpu_custom_call.1} parent=1 // pred_check
      _
    $region11: #{tpu_custom_call.1} parent=1 // pred_check_branch
      %23 = sbr.rel (0) target = $region13
    $region12: #{tpu_custom_call.1} parent=1 // pred_region
      _
    $region13: #{tpu_custom_call.1} parent=1 // pred_fallthru
      _
    // Predicated region
    $region14: #{tpu_custom_call.1} parent=1 // pred_check
      _
    $region15: #{tpu_custom_call.1} parent=1 // pred_check_branch
      %25 = sbr.rel (0) target = $region17
    $region16: #{tpu_custom_call.1} parent=1 // pred_region
      _
    $region17: #{tpu_custom_call.1} parent=1 // pred_fallthru
      _
    // Predicated region
    $region18: #{tpu_custom_call.1} parent=1 // pred_check
      _
    $region19: #{tpu_custom_call.1} parent=1 // pred_check_branch
      %27 = sbr.rel (0) target = $region21
    $region20: #{tpu_custom_call.1} parent=1 // pred_region
      %29 = vsyncadd [#allocation3], 0
      %s30 = sshll.u32 %s4, 4
      %s31 = int_to_ptr.hbm [resolvable:$true] %s30
      %s32 = sshll.u32 [#allocation2], 4
      %s33 = int_to_ptr.vmem [resolvable:$true] %s32
      %38 = dma.hbm_to_vmem [thread:$0]  %s31, 2048, %s33, [#allocation3], 128, 128, 8
    $region21: #{tpu_custom_call.1} parent=1 // pred_fallthru
      _
    // Predicated region
    $region22: #{tpu_custom_call.1} parent=1 // pred_check
      _
    $region23: #{tpu_custom_call.1} parent=1 // pred_check_branch
      %40 = sbr.rel (0) target = $region25
    $region24: #{tpu_custom_call.1} parent=1 // pred_region
      _
    $region25: #{tpu_custom_call.1} parent=1 // pred_fallthru
      _
    // Predicated region
    $region26: #{tpu_custom_call.1} parent=1 // pred_check
      _
    $region27: #{tpu_custom_call.1} parent=1 // pred_check_branch
      %42 = sbr.rel (0) target = $region29
    $region28: #{tpu_custom_call.1} parent=1 // pred_region
      %44 = vsyncadd [#allocation6], 0
      %s45 = sshll.u32 %s6, 4
      %s46 = int_to_ptr.hbm [resolvable:$true] %s45
      %s47 = sshll.u32 [#allocation5], 4
      %s48 = int_to_ptr.vmem [resolvable:$true] %s47
      %53 = dma.hbm_to_vmem [thread:$0]  %s46, 2048, %s48, [#allocation6], 128, 128, 8
    $region29: #{tpu_custom_call.1} parent=1 // pred_fallthru
      _
    // Predicated region
    $region30: #{tpu_custom_call.1} parent=1 // pred_check
      _
    $region31: #{tpu_custom_call.1} parent=1 // pred_check_branch
      %55 = sbr.rel (0) target = $region33
    $region32: #{tpu_custom_call.1} parent=1 // pred_region
      _
    $region33: #{tpu_custom_call.1} parent=1 // pred_fallthru
      _
    // Predicated region
    $region34: #{tpu_custom_call.1} parent=1 // pred_check
      _
    $region35: #{tpu_custom_call.1} parent=1 // pred_check_branch
      %57 = sbr.rel (0) target = $region37
    $region36: #{tpu_custom_call.1} parent=1 // pred_region
      %59 = vsyncadd [#allocation6], 0
      %s60 = sshll.u32 %s8, 4
      %s61 = int_to_ptr.hbm [resolvable:$true] %s60
      %s62 = sshll.u32 [#allocation7], 4
      %s63 = int_to_ptr.vmem [resolvable:$true] %s62
      %68 = dma.hbm_to_vmem [thread:$0]  %s61, 2048, %s63, [#allocation6], 128, 128, 8
    $region37: #{tpu_custom_call.1} parent=1 // pred_fallthru
      _
    // Predicated region
    $region38: #{tpu_custom_call.1} parent=1 // pred_check
      _
    $region39: #{tpu_custom_call.1} parent=1 // pred_check_branch
      %70 = sbr.rel (0) target = $region41
    $region40: #{tpu_custom_call.1} parent=1 // pred_region
      _
    $region41: #{tpu_custom_call.1} parent=1 // pred_fallthru
      _
    // Predicated region
    $region42: #{tpu_custom_call.1} parent=1 // pred_check
      _
    $region43: #{tpu_custom_call.1} parent=1 // pred_check_branch
      %72 = sbr.rel (0) target = $region45
    $region44: #{tpu_custom_call.1} parent=1 // pred_region
      %74 = dma.done [#allocation3], 2048
    $region45: #{tpu_custom_call.1} parent=1 // pred_fallthru
      _
    // Predicated region
    $region46: #{tpu_custom_call.1} parent=1 // pred_check
      _
    $region47: #{tpu_custom_call.1} parent=1 // pred_check_branch
      %76 = sbr.rel (0) target = $region49
    $region48: #{tpu_custom_call.1} parent=1 // pred_region
      %78 = dma.done [#allocation6], 2048
    $region49: #{tpu_custom_call.1} parent=1 // pred_fallthru
      _
    // Predicated region
    $region50: #{tpu_custom_call.1} parent=1 // pred_check
      _
    $region51: #{tpu_custom_call.1} parent=1 // pred_check_branch
      %80 = sbr.rel (0) target = $region53
    $region52: #{tpu_custom_call.1} parent=1 // pred_region
      %82 = dma.done [#allocation6], 2048
    $region53: #{tpu_custom_call.1} parent=1 // pred_fallthru
      _
    %v84 = vld [vmem:[%s3] sm:$0xff]
    %v85 = vld [vmem:[%s3 + $0x8] sm:$0xff]
    %v86 = vld [vmem:[%s0] sm:$0xf]
    %v87 = vld [vmem:[%s0 + $0x4] sm:$0xf]
    %v88 = vld [vmem:[%s1] sm:$0xff]
    %v89 = vld [vmem:[%s1 + $0x8] sm:$0xff]
    %v90 = vld [vmem:[%s2] sm:$0xff]
    %v91 = vld [vmem:[%s2 + $0x8] sm:$0xff]
    %v92 = vld [vmem:[#allocation2] sm:$0xff]
    %v93 = vld [vmem:[#allocation2 + $0x8] sm:$0xff]
    %v94 = vld [vmem:[#allocation2 + $0x10] sm:$0xff]
    %v95 = vld [vmem:[#allocation2 + $0x18] sm:$0xff]
    %v96 = vld [vmem:[#allocation2 + $0x20] sm:$0xff]
    %v97 = vld [vmem:[#allocation2 + $0x28] sm:$0xff]
    %v98 = vld [vmem:[#allocation2 + $0x30] sm:$0xff]
    %v99 = vld [vmem:[#allocation2 + $0x38] sm:$0xff]
    %v100 = vld [vmem:[#allocation2 + $0x40] sm:$0xff]
    %v101 = vld [vmem:[#allocation2 + $0x48] sm:$0xff]
    %v102 = vld [vmem:[#allocation2 + $0x50] sm:$0xff]
    %v103 = vld [vmem:[#allocation2 + $0x58] sm:$0xff]
    %v104 = vld [vmem:[#allocation2 + $0x60] sm:$0xff]
    %v105 = vld [vmem:[#allocation2 + $0x68] sm:$0xff]
    %v106 = vld [vmem:[#allocation2 + $0x70] sm:$0xff]
    %v107 = vld [vmem:[#allocation2 + $0x78] sm:$0xff]
    %v108 = vld [vmem:[%s5] sm:$0x1]
    %110 = vset.pattern.permute.xlu0 0
    %111 = vperm.xlu0 %110, %v88
    %v112 = vpop.permute.xlu0 %111
    %115 = vset.pattern.permute.xlu0 0
    %116 = vperm.xlu0 %115, %v89
    %v117 = vpop.permute.xlu0 %116
    %v119 = vmul.f32 %v84, %v112
    %v120 = vmul.f32 %v85, %v117
    %v121 = vpack.c.bf16 %v120, %v119
    %v124 = vunpack.c.l.b16 %v86
    %v125 = vunpack.c.l.b16 %v87
    %v126 = vpack.c.b16 %v125, %v124
    %vm127 = vcmask 130048
    %v129 = vsel %vm127, %v126, 0
    %131 = vmatpush.bf16.msra.mxu0 0
    %132 = vmatpush.bf16.msra.mxu0 0
    %133 = vmatpush.bf16.msra.mxu0 0
    %134 = vmatpush.bf16.msra.mxu0 0
    %135 = vmatpush.bf16.msra.mxu0 0
    %136 = vmatpush.bf16.msra.mxu0 0
    %137 = vmatpush.bf16.msra.mxu0 0
    %138 = vmatpush.bf16.msra.mxu0 %v121
    %139 = vmatmul.bf16.gmra.mxu0 %v129
    %v140 = vpop.f32.mrf.mxu0
    %v141 = vadd.f32 0.0, %v140
    %v142 = vpop.f32.mrf.mxu0
    %v143 = vadd.f32 0.0, %v142
    %144 = vdwg.mxu0
    %146 = vset.pattern.permute.xlu0 0
    %147 = vperm.xlu0 %146, %v90
    %v148 = vpop.permute.xlu0 %147
    %151 = vset.pattern.permute.xlu0 0
    %152 = vperm.xlu0 %151, %v91
    %v153 = vpop.permute.xlu0 %152
    %v155 = vmul.f32 %v141, %v148
    %v156 = vmul.f32 %v143, %v153
    %v158 = vperm.slane %v108, 0
    %160 = vmatpush.msra.mxu0 %v107
    %161 = vmatpush.msra.mxu0 %v106
    %162 = vmatpush.msra.mxu0 %v105
    %163 = vmatpush.msra.mxu0 %v104
    %164 = vmatpush.msra.mxu0 %v103
    %165 = vmatpush.msra.mxu0 %v102
    %166 = vmatpush.msra.mxu0 %v101
    %167 = vmatpush.msra.mxu0 %v100
    %168 = vmatpush.msra.mxu0 %v99
    %169 = vmatpush.msra.mxu0 %v98
    %170 = vmatpush.msra.mxu0 %v97
    %171 = vmatpush.msra.mxu0 %v96
    %172 = vmatpush.msra.mxu0 %v95
    %173 = vmatpush.msra.mxu0 %v94
    %174 = vmatpush.msra.mxu0 %v93
    %175 = vmatpush.msra.mxu0 %v92
    %176 = vmatmul.f32.gmra.mxu0 %v155
    %v177 = vpop.f32.mrf.mxu0
    %v178 = vadd.f32 %v158, %v177
    %179 = vmatmul.f32.gmra.mxu0 %v156
    %v180 = vpop.f32.mrf.mxu0
    %v181 = vadd.f32 %v158, %v180
    %182 = vdwg.mxu0
    %v183 = vmax.f32 %v178, 0.0
    %v184 = vmax.f32 %v181, 0.0
    %v185 = vld [vmem:[#allocation5] sm:$0xff]
    %v186 = vld [vmem:[#allocation5 + $0x8] sm:$0xff]
    %v187 = vld [vmem:[#allocation5 + $0x10] sm:$0xff]
    %v188 = vld [vmem:[#allocation5 + $0x18] sm:$0xff]
    %v189 = vld [vmem:[#allocation5 + $0x20] sm:$0xff]
    %v190 = vld [vmem:[#allocation5 + $0x28] sm:$0xff]
    %v191 = vld [vmem:[#allocation5 + $0x30] sm:$0xff]
    %v192 = vld [vmem:[#allocation5 + $0x38] sm:$0xff]
    %v193 = vld [vmem:[#allocation5 + $0x40] sm:$0xff]
    %v194 = vld [vmem:[#allocation5 + $0x48] sm:$0xff]
    %v195 = vld [vmem:[#allocation5 + $0x50] sm:$0xff]
    %v196 = vld [vmem:[#allocation5 + $0x58] sm:$0xff]
    %v197 = vld [vmem:[#allocation5 + $0x60] sm:$0xff]
    %v198 = vld [vmem:[#allocation5 + $0x68] sm:$0xff]
    %v199 = vld [vmem:[#allocation5 + $0x70] sm:$0xff]
    %v200 = vld [vmem:[#allocation5 + $0x78] sm:$0xff]
    %v201 = vld [vmem:[%s7] sm:$0x1]
    %v202 = vmul.f32 %v183, %v112
    %v203 = vmul.f32 %v184, %v117
    %v204 = vpack.c.bf16 %v203, %v202
    %205 = vmatpush.bf16.msra.mxu0 0
    %206 = vmatpush.bf16.msra.mxu0 0
    %207 = vmatpush.bf16.msra.mxu0 0
    %208 = vmatpush.bf16.msra.mxu0 0
    %209 = vmatpush.bf16.msra.mxu0 0
    %210 = vmatpush.bf16.msra.mxu0 0
    %211 = vmatpush.bf16.msra.mxu0 0
    %212 = vmatpush.bf16.msra.mxu0 %v204
    %213 = vmatmul.bf16.gmra.mxu0 %v129
    %v214 = vpop.f32.mrf.mxu0
    %v215 = vadd.f32 0.0, %v214
    %v216 = vpop.f32.mrf.mxu0
    %v217 = vadd.f32 0.0, %v216
    %218 = vdwg.mxu0
    %v219 = vmul.f32 %v215, %v148
    %v220 = vmul.f32 %v217, %v153
    %v222 = vperm.slane %v201, 0
    %224 = vmatpush.msra.mxu0 %v200
    %225 = vmatpush.msra.mxu0 %v199
    %226 = vmatpush.msra.mxu0 %v198
    %227 = vmatpush.msra.mxu0 %v197
    %228 = vmatpush.msra.mxu0 %v196
    %229 = vmatpush.msra.mxu0 %v195
    %230 = vmatpush.msra.mxu0 %v194
    %231 = vmatpush.msra.mxu0 %v193
    %232 = vmatpush.msra.mxu0 %v192
    %233 = vmatpush.msra.mxu0 %v191
    %234 = vmatpush.msra.mxu0 %v190
    %235 = vmatpush.msra.mxu0 %v189
    %236 = vmatpush.msra.mxu0 %v188
    %237 = vmatpush.msra.mxu0 %v187
    %238 = vmatpush.msra.mxu0 %v186
    %239 = vmatpush.msra.mxu0 %v185
    %240 = vmatmul.f32.gmra.mxu0 %v219
    %v241 = vpop.f32.mrf.mxu0
    %v242 = vadd.f32 %v222, %v241
    %243 = vmatmul.f32.gmra.mxu0 %v220
    %v244 = vpop.f32.mrf.mxu0
    %v245 = vadd.f32 %v222, %v244
    %246 = vdwg.mxu0
    %v247 = vmax.f32 %v242, 0.0
    %v248 = vmax.f32 %v245, 0.0
    %v249 = vld [vmem:[#allocation7] sm:$0xff]
    %v250 = vld [vmem:[#allocation7 + $0x8] sm:$0xff]
    %v251 = vld [vmem:[#allocation7 + $0x10] sm:$0xff]
    %v252 = vld [vmem:[#allocation7 + $0x18] sm:$0xff]
    %v253 = vld [vmem:[#allocation7 + $0x20] sm:$0xff]
    %v254 = vld [vmem:[#allocation7 + $0x28] sm:$0xff]
    %v255 = vld [vmem:[#allocation7 + $0x30] sm:$0xff]
    %v256 = vld [vmem:[#allocation7 + $0x38] sm:$0xff]
    %v257 = vld [vmem:[#allocation7 + $0x40] sm:$0xff]
    %v258 = vld [vmem:[#allocation7 + $0x48] sm:$0xff]
    %v259 = vld [vmem:[#allocation7 + $0x50] sm:$0xff]
    %v260 = vld [vmem:[#allocation7 + $0x58] sm:$0xff]
    %v261 = vld [vmem:[#allocation7 + $0x60] sm:$0xff]
    %v262 = vld [vmem:[#allocation7 + $0x68] sm:$0xff]
    %v263 = vld [vmem:[#allocation7 + $0x70] sm:$0xff]
    %v264 = vld [vmem:[#allocation7 + $0x78] sm:$0xff]
    %v265 = vld [vmem:[%s9] sm:$0x1]
    %266 = vmatpush.msra.mxu0 %v264
    %267 = vmatpush.msra.mxu0 %v263
    %268 = vmatpush.msra.mxu0 %v262
    %269 = vmatpush.msra.mxu0 %v261
    %270 = vmatpush.msra.mxu0 %v260
    %271 = vmatpush.msra.mxu0 %v259
    %272 = vmatpush.msra.mxu0 %v258
    %273 = vmatpush.msra.mxu0 %v257
    %274 = vmatpush.msra.mxu0 %v256
    %275 = vmatpush.msra.mxu0 %v255
    %276 = vmatpush.msra.mxu0 %v254
    %277 = vmatpush.msra.mxu0 %v253
    %278 = vmatpush.msra.mxu0 %v252
    %279 = vmatpush.msra.mxu0 %v251
    %280 = vmatpush.msra.mxu0 %v250
    %281 = vmatpush.msra.mxu0 %v249
    %282 = vmatmul.f32.gmra.mxu0 %v247
    %v283 = vpop.f32.mrf.mxu0
    %v284 = vadd.f32 0.0, %v283
    %285 = vmatmul.f32.gmra.mxu0 %v248
    %v286 = vpop.f32.mrf.mxu0
    %v287 = vadd.f32 0.0, %v286
    %288 = vdwg.mxu0
    %v289 = vmul.f32 %v284, %v112
    %v290 = vmul.f32 %v287, %v117
    %v291 = vpack.c.bf16 %v290, %v289
    %292 = vmatpush.bf16.msra.mxu0 0
    %293 = vmatpush.bf16.msra.mxu0 0
    %294 = vmatpush.bf16.msra.mxu0 0
    %295 = vmatpush.bf16.msra.mxu0 0
    %296 = vmatpush.bf16.msra.mxu0 0
    %297 = vmatpush.bf16.msra.mxu0 0
    %298 = vmatpush.bf16.msra.mxu0 0
    %299 = vmatpush.bf16.msra.mxu0 %v291
    %300 = vmatmul.bf16.gmra.mxu0 %v129
    %v301 = vpop.f32.mrf.mxu0
    %v302 = vadd.f32 0.0, %v301
    %v303 = vpop.f32.mrf.mxu0
    %v304 = vadd.f32 0.0, %v303
    %305 = vdwg.mxu0
    %v306 = vmul.f32 %v302, %v148
    %v307 = vmul.f32 %v304, %v153
    %v309 = vperm.slane %v265, 0
    %v311 = vadd.f32 %v306, %v309
    %v312 = vadd.f32 %v307, %v309
    %313 = vst [vmem:[#allocation8] sm:$0xff] %v311
    %314 = vst [vmem:[#allocation8 + $0x8] sm:$0xff] %v312
    // Predicated region
    $region54: #{tpu_custom_call.1} parent=1 // pred_check
      _
    $region55: #{tpu_custom_call.1} parent=1 // pred_check_branch
      %316 = sbr.rel (0) target = $region57
    $region56: #{tpu_custom_call.1} parent=1 // pred_region
      %318 = vsyncadd [#allocation4], 0
      %s319 = sshll.u32 [#allocation8], 4
      %s320 = int_to_ptr.vmem [resolvable:$true] %s319
      %s321 = sshll.u32 %s10, 4
      %s322 = int_to_ptr.hbm [resolvable:$true] %s321
      %327 = dma.vmem_to_hbm [thread:$0]  %s320, 256, %s322, [#allocation4], 128, 128, 8
    $region57: #{tpu_custom_call.1} parent=1 // pred_fallthru
      _
    // Predicated region
    $region58: #{tpu_custom_call.1} parent=1 // pred_check
      _
    $region59: #{tpu_custom_call.1} parent=1 // pred_check_branch
      %329 = sbr.rel (0) target = $region61
    $region60: #{tpu_custom_call.1} parent=1 // pred_region
      %331 = dma.done [#allocation4], 256
    $region61: #{tpu_custom_call.1} parent=1 // pred_fallthru
      _
    %332 = vsyncpa [#allocation3], 1
    %333 = vsyncpa [#allocation6], 1
    %334 = vsyncpa [#allocation4], 1

</llo_original>
